<compile_context>
chip_gen: v6e
topology: v6e:2x2x1
jax: 0.10.0
libtpu: 0.0.40
codegen_flags: <defaults>
</compile_context>

<pallas_src>
import jax
import jax.numpy as jnp
from jax import lax
from jax.experimental import pallas as pl
from jax.experimental.pallas import tpu as pltpu

NS = 0.1                 # LeakyReLU negative_slope used throughout the module
_STATIC_UNROLL_MAX = 8   # static per-row unroll below this Bt, fori_loop above


def _leaky(v, ns=NS):
    return jnp.where(v >= 0, v, ns * v)


def _leaky2(v, ns=NS):
    # leaky(leaky(x)) fused into one select (leaky preserves sign)
    return jnp.where(v >= 0, v, (ns * ns) * v)


# ---------------------------------------------------------------------------
# Fused kernel: one grid step = Bt batch rows
#   xt_ref  : (Bt, M, N)  activation tile, layer-1-ready layout (M on sublanes,
#                         N on lanes) -> canonical dots, no in-kernel transposes
#   wp_ref  : (32, W)     packed MLP weights in PyTorch (out, in) layout:
#                           rows  0:16, cols 0:M  -> W1 (16, M)
#                           rows 16:24, cols 0:16 -> W2 (8, 16)
#                           rows 24:28, cols 0:8  -> W3 (4, 8)
#   bp_ref  : (32, 1)     packed bias columns: 0:16 b1, 16:24 b2, 24:28 b3
#   tail_ref: (8,) SMEM   [w4_0..w4_3, b4, 0, 0, 0] scalars
#   wdt_ref : (N, N)      dense_layer1 weight PRE-TRANSPOSED at pack time (wd.T)
#   bd_ref  : (1, N)      dense_layer1 bias, lane-dense row
#   o_ref   : (Bt, N)     output tile (lane-dense store)
#   h4_ref  : (Bt, N)     VMEM scratch holding the DirectInputLayer output
# ---------------------------------------------------------------------------
def fused_kernel(xt_ref, wp_ref, bp_ref, tail_ref, wdt_ref, bd_ref, o_ref, h4_ref):
    Bt, M, _ = xt_ref.shape

    w1 = wp_ref[0:16, 0:M]        # (16, M)
    w2 = wp_ref[16:24, 0:16]      # (8, 16)
    w3 = wp_ref[24:28, 0:8]       # (4, 8)
    b1 = bp_ref[0:16, :]          # (16, 1) -> broadcast along lanes
    b2 = bp_ref[16:24, :]         # (8, 1)
    b3 = bp_ref[24:28, :]         # (4, 1)

    def mlp_row(xt_row):          # (M, N) -> (1, N)
        # All three matmuls are canonical (out,k)@(k,N): MXU-native, no transposes.
        h = _leaky(jnp.dot(w1, xt_row, preferred_element_type=jnp.float32) + b1)  # (16,N)
        h = _leaky(jnp.dot(w2, h, preferred_element_type=jnp.float32) + b2)       # (8, N)
        h = _leaky(jnp.dot(w3, h, preferred_element_type=jnp.float32) + b3)       # (4, N)
        # d_layer4 (4 -> 1): unrolled VPU multiply-adds with SMEM scalars
        h4 = h[0:1, :] * tail_ref[0] + tail_ref[4]
        for k in range(1, 4):
            h4 = h4 + h[k:k + 1, :] * tail_ref[k]
        # LeakyReLU(d_layer4) followed by relu1 (also LeakyReLU, ns=0.1): fused.
        return _leaky2(h4)                                                          # (1, N)

    if Bt <= _STATIC_UNROLL_MAX:
        for r in range(Bt):                           # static unroll, static indices
            h4_ref[r:r + 1, :] = mlp_row(xt_ref[r])
    else:
        def body(r, carry):
            h4_ref[pl.ds(r, 1), :] = mlp_row(xt_ref[r])
            return carry
        lax.fori_loop(0, Bt, body, 0)

    # dense_layer1 batched over all Bt rows: one MXU matmul + one lane-dense store.
    out = jnp.dot(h4_ref[...], wdt_ref[...], preferred_element_type=jnp.float32)
    o_ref[...] = (out + bd_ref[...]).astype(o_ref.dtype)


# ---------------------------------------------------------------------------
# Batch-tile selection and forward wrapper
# ---------------------------------------------------------------------------
def _pick_batch_tile(B, max_bt=256):
    """Largest divisor of B that is <= max_bt while keeping >= 2 grid steps
    (keeps both v7x TensorCores busy).  max_bt=256 fills the v6e/v7x MXU;
    pass max_bt=128 on v5e."""
    if B <= 1:
        return max(B, 1)
    best = 1
    for d in range(1, min(B // 2, max_bt) + 1):
        if B % d == 0:
            best = d
    return best


def single_layer_network_forward(xoh, packed, *, batch_tile=None):
    """xoh: (B, N, M) float32; packed = pack_params(...); returns (B, N) float32."""
    B, N, M = xoh.shape
    wp, bp, tail, wdt, bd_row = packed
    Bt = batch_tile if batch_tile is not None else _pick_batch_tile(B)
    assert B % Bt == 0, "batch tile must divide the batch"
    G = B // Bt

    # Layer-1-ready layout (B, M, N), done ONCE outside the grid loop.  In
    # production the producer should emit this layout directly; either way no
    # transpose runs inside the kernel's grid loop.
    xt = jnp.transpose(xoh.astype(jnp.float32), (0, 2, 1)).reshape(G, Bt, M, N)

    # Explicit VMEM budgeting (v7x: 64 MiB physical, 32 MiB default scoped).
    vmem_est = 4 * (2 * Bt * M * N + 2 * Bt * N + 2 * N * N + 2 * N + Bt * N) + (1 << 16)
    cp = dict(dimension_semantics=("parallel",))
    if vmem_est > (32 << 20):
        cp["vmem_limit_bytes"] = min(vmem_est + (4 << 20), 64 << 20)

    out = pl.pallas_call(
        fused_kernel,
        out_shape=jax.ShapeDtypeStruct((G, Bt, N), jnp.float32),
        grid=(G,),
        in_specs=[
            # Per-step activation tile (leading grid dim squeezed out).
            pl.BlockSpec((None, Bt, M, N), lambda g: (g, 0, 0, 0)),
            # Constant-index weights stay VMEM resident across grid steps.
            # (On v7x at large N, add pipeline_mode=pl.Buffered(1) to these
            #  specs: constant index_map => multi-buffering buys nothing.)
            pl.BlockSpec(wp.shape, lambda g: (0, 0)),
            pl.BlockSpec(bp.shape, lambda g: (0, 0)),
            pl.BlockSpec(memory_space=pltpu.MemorySpace.SMEM),   # layer-4 scalars
            pl.BlockSpec(wdt.shape, lambda g: (0, 0)),
            pl.BlockSpec(bd_row.shape, lambda g: (0, 0)),
        ],
        out_specs=pl.BlockSpec((None, Bt, N), lambda g: (g, 0, 0)),
        scratch_shapes=[pltpu.VMEM((Bt, N), jnp.float32)],
        compiler_params=pltpu.CompilerParams(**cp),
    )(xt, wp, bp, tail, wdt, bd_row)
    return out.reshape(B, N)


# ---------------------------------------------------------------------------
# Parameter init (PyTorch Linear-style) + one-time packing (outside hot path)
# ---------------------------------------------------------------------------
def init_params(key, network_size, inputs_per_neuron):
    def linear(key, fan_in, fan_out):
        kw, kb = jax.random.split(key)
        bound = 1.0 / jnp.sqrt(jnp.float32(fan_in))
        # Weight stored as (fan_in, fan_out) == W^T so the reference does x @ W
        w = jax.random.uniform(kw, (fan_in, fan_out), jnp.float32, -bound, bound)
        b = jax.random.uniform(kb, (fan_out,), jnp.float32, -bound, bound)
        return w, b

    keys = jax.random.split(key, 5)
    w1, b1 = linear(keys[0], inputs_per_neuron, 16)
    w2, b2 = linear(keys[1], 16, 8)
    w3, b3 = linear(keys[2], 8, 4)
    w4, b4 = linear(keys[3], 4, 1)
    kwd, kbd = jax.random.split(keys[4])
    bound = 1.0 / jnp.sqrt(jnp.float32(network_size))
    # dense_layer1 weight in PyTorch (out, in) layout
    wd = jax.random.uniform(kwd, (network_size, network_size), jnp.float32, -bound, bound)
    bd = jax.random.uniform(kbd, (network_size,), jnp.float32, -bound, bound)
    return {"direct": (w1, b1, w2, b2, w3, b3, w4, b4), "dense": (wd, bd)}


def pack_params(raw, inputs_per_neuron):
    """One-time packing at init time (NOT per forward call)."""
    w1, b1, w2, b2, w3, b3, w4, b4 = raw["direct"]
    wd, bd = raw["dense"]
    M = inputs_per_neuron
    W = max(M, 16)

    # MLP weights in PyTorch (out, in) layout -> canonical (out,k)@(k,N) dots.
    wp = jnp.zeros((32, W), jnp.float32)
    wp = wp.at[0:16, 0:M].set(w1.T)        # (16, M)
    wp = wp.at[16:24, 0:16].set(w2.T)      # (8, 16)
    wp = wp.at[24:28, 0:8].set(w3.T)       # (4, 8)

    bp = jnp.zeros((32, 1), jnp.float32)
    bp = bp.at[0:16, 0].set(b1)
    bp = bp.at[16:24, 0].set(b2)
    bp = bp.at[24:28, 0].set(b3)

    tail = jnp.zeros((8,), jnp.float32)
    tail = tail.at[0:4].set(w4[:, 0])      # d_layer4 weight column
    tail = tail.at[4].set(b4[0])           # d_layer4 bias

    # dense_layer1 weight pre-transposed ONCE so the in-kernel dense matmul is
    # the canonical (Bt,N)@(N,N) contraction -> no per-step transpose.
    wdt = wd.T

    return (wp, bp, tail, wdt, bd.reshape(1, -1))


# ---------------------------------------------------------------------------
# Pure-JAX reference (eval-mode semantics, dropout = identity)
# ---------------------------------------------------------------------------
def ref_forward(xoh, raw):
    w1, b1, w2, b2, w3, b3, w4, b4 = raw["direct"]
    wd, bd = raw["dense"]
    h = xoh
    h = _leaky(h @ w1 + b1)
    h = _leaky(h @ w2 + b2)
    h = _leaky(h @ w3 + b3)
    h = _leaky(h @ w4 + b4)
    h = h.squeeze(-1)
    h = _leaky(h)          # relu1 is LeakyReLU(0.1) in the module
    return h @ wd.T + bd   # dense_layer1


if __name__ == "__main__":
    # Small shapes consistent with the module's forward:
    #   xoh: (batch, network_size, inputs_per_neuron)
    batch, network_size, inputs_per_neuron = 2, 128, 32

    key = jax.random.PRNGKey(0)
    kx, kp = jax.random.split(key)
    xoh = jax.random.normal(kx, (batch, network_size, inputs_per_neuron), jnp.float32)

    raw = init_params(kp, network_size, inputs_per_neuron)
    packed = pack_params(raw, inputs_per_neuron)   # one-time, outside the hot path

    # TODO(synk): nn.Dropout (p=0.15) is treated as identity (eval mode); training-mode
    #             stochastic dropout (pltpu.prng_*) is not implemented.

    out = single_layer_network_forward(xoh, packed)
    out = jax.block_until_ready(out)
    assert out.shape == (batch, network_size) and out.dtype == jnp.float32

    ref_out = ref_forward(xoh, raw)
    max_err = float(jnp.max(jnp.abs(out - ref_out)))
    assert jnp.allclose(out, ref_out, atol=2e-4, rtol=2e-4), max_err

    print("KERNEL_OK")
</pallas_src>

<mosaic_0001>
module attributes {stable_mosaic.version = 11 : i64} {
  func.func @fused_kernel(%arg0: i32, %arg1: memref<1x1x32x128xf32, #tpu.memory_space<vmem>>, %arg2: memref<32x32xf32, #tpu.memory_space<vmem>>, %arg3: memref<32x1xf32, #tpu.memory_space<vmem>>, %arg4: memref<8xf32, #tpu.memory_space<smem>>, %arg5: memref<128x128xf32, #tpu.memory_space<vmem>>, %arg6: memref<1x128xf32, #tpu.memory_space<vmem>>, %arg7: memref<1x1x128xf32, #tpu.memory_space<vmem>>, %arg8: memref<1x128xf32, #tpu.memory_space<vmem>>) attributes {dimension_semantics = [#tpu.dimension_semantics<parallel>], iteration_bounds = array<i64: 2>, scalar_prefetch = 0 : i64, scratch_operands = 1 : i64, tpu.core_type = #tpu.core_type<tc>, window_params = [{transform_indices = @transform_0, window_bounds = array<i64: 1, 1, 32, 128>}, {pipeline_mode = #tpu.pipeline_mode<synchronous>, transform_indices = @transform_1, window_bounds = array<i64: 32, 32>}, {pipeline_mode = #tpu.pipeline_mode<synchronous>, transform_indices = @transform_2, window_bounds = array<i64: 32, 1>}, {transform_indices = @transform_3, window_bounds = array<i64: 8>}, {pipeline_mode = #tpu.pipeline_mode<synchronous>, transform_indices = @transform_4, window_bounds = array<i64: 128, 128>}, {pipeline_mode = #tpu.pipeline_mode<synchronous>, transform_indices = @transform_5, window_bounds = array<i64: 1, 128>}, {transform_indices = @transform_6, window_bounds = array<i64: 1, 1, 128>}]} {
    %c0 = arith.constant 0 : index
    %c0_0 = arith.constant 0 : index
    %0 = vector.load %arg2[%c0, %c0_0] : memref<32x32xf32, #tpu.memory_space<vmem>>, vector<16x32xf32>
    %c16 = arith.constant 16 : index
    %c0_1 = arith.constant 0 : index
    %1 = vector.load %arg2[%c16, %c0_1] : memref<32x32xf32, #tpu.memory_space<vmem>>, vector<8x16xf32>
    %c24 = arith.constant 24 : index
    %c0_2 = arith.constant 0 : index
    %2 = vector.load %arg2[%c24, %c0_2] : memref<32x32xf32, #tpu.memory_space<vmem>>, vector<4x8xf32>
    %c0_3 = arith.constant 0 : index
    %c0_4 = arith.constant 0 : index
    %3 = vector.load %arg3[%c0_3, %c0_4] : memref<32x1xf32, #tpu.memory_space<vmem>>, vector<16x1xf32>
    %c16_5 = arith.constant 16 : index
    %c0_6 = arith.constant 0 : index
    %4 = vector.load %arg3[%c16_5, %c0_6] : memref<32x1xf32, #tpu.memory_space<vmem>>, vector<8x1xf32>
    %c24_7 = arith.constant 24 : index
    %c0_8 = arith.constant 0 : index
    %5 = vector.load %arg3[%c24_7, %c0_8] : memref<32x1xf32, #tpu.memory_space<vmem>>, vector<4x1xf32>
    %c0_9 = arith.constant 0 : index
    %c0_10 = arith.constant 0 : index
    %c0_11 = arith.constant 0 : index
    %c0_12 = arith.constant 0 : index
    %6 = vector.load %arg1[%c0_9, %c0_10, %c0_11, %c0_12] : memref<1x1x32x128xf32, #tpu.memory_space<vmem>>, vector<1x1x32x128xf32>
    %7 = vector.shape_cast %6 : vector<1x1x32x128xf32> to vector<32x128xf32>
    %cst = arith.constant dense<0.000000e+00> : vector<16x128xf32>
    %8 = tpu.matmul %0, %7, %cst {dimension_numbers = #tpu.dot_dimension_numbers<[1], [0], [0], [1], [0, 0, 1, 1], [], []>} : vector<16x32xf32>, vector<32x128xf32>, vector<16x128xf32> -> vector<16x128xf32>
    %9 = vector.broadcast %3 : vector<16x1xf32> to vector<16x128xf32>
    %10 = arith.addf %8, %9 : vector<16x128xf32>
    %cst_13 = arith.constant 0.000000e+00 : f32
    %11 = vector.broadcast %cst_13 : f32 to vector<16x128xf32>
    %12 = arith.cmpf oge, %10, %11 : vector<16x128xf32>
    %cst_14 = arith.constant 1.000000e-01 : f32
    %13 = vector.broadcast %cst_14 : f32 to vector<16x128xf32>
    %14 = arith.mulf %13, %10 : vector<16x128xf32>
    %15 = arith.select %12, %10, %14 : vector<16x128xi1>, vector<16x128xf32>
    %cst_15 = arith.constant dense<0.000000e+00> : vector<8x128xf32>
    %16 = tpu.matmul %1, %15, %cst_15 {dimension_numbers = #tpu.dot_dimension_numbers<[1], [0], [0], [1], [0, 0, 1, 1], [], []>} : vector<8x16xf32>, vector<16x128xf32>, vector<8x128xf32> -> vector<8x128xf32>
    %17 = vector.broadcast %4 : vector<8x1xf32> to vector<8x128xf32>
    %18 = arith.addf %16, %17 : vector<8x128xf32>
    %cst_16 = arith.constant 0.000000e+00 : f32
    %19 = vector.broadcast %cst_16 : f32 to vector<8x128xf32>
    %20 = arith.cmpf oge, %18, %19 : vector<8x128xf32>
    %cst_17 = arith.constant 1.000000e-01 : f32
    %21 = vector.broadcast %cst_17 : f32 to vector<8x128xf32>
    %22 = arith.mulf %21, %18 : vector<8x128xf32>
    %23 = arith.select %20, %18, %22 : vector<8x128xi1>, vector<8x128xf32>
    %cst_18 = arith.constant dense<0.000000e+00> : vector<4x128xf32>
    %24 = tpu.matmul %2, %23, %cst_18 {dimension_numbers = #tpu.dot_dimension_numbers<[1], [0], [0], [1], [0, 0, 1, 1], [], []>} : vector<4x8xf32>, vector<8x128xf32>, vector<4x128xf32> -> vector<4x128xf32>
    %25 = vector.broadcast %5 : vector<4x1xf32> to vector<4x128xf32>
    %26 = arith.addf %24, %25 : vector<4x128xf32>
    %cst_19 = arith.constant 0.000000e+00 : f32
    %27 = vector.broadcast %cst_19 : f32 to vector<4x128xf32>
    %28 = arith.cmpf oge, %26, %27 : vector<4x128xf32>
    %cst_20 = arith.constant 1.000000e-01 : f32
    %29 = vector.broadcast %cst_20 : f32 to vector<4x128xf32>
    %30 = arith.mulf %29, %26 : vector<4x128xf32>
    %31 = arith.select %28, %26, %30 : vector<4x128xi1>, vector<4x128xf32>
    %32 = vector.extract_strided_slice %31 {offsets = [0, 0], sizes = [1, 128], strides = [1, 1]} : vector<4x128xf32> to vector<1x128xf32>
    %c0_21 = arith.constant 0 : index
    %33 = memref.load %arg4[%c0_21] : memref<8xf32, #tpu.memory_space<smem>>
    %34 = vector.broadcast %33 : f32 to vector<1x128xf32>
    %35 = arith.mulf %32, %34 : vector<1x128xf32>
    %c4 = arith.constant 4 : index
    %36 = memref.load %arg4[%c4] : memref<8xf32, #tpu.memory_space<smem>>
    %37 = vector.broadcast %36 : f32 to vector<1x128xf32>
    %38 = arith.addf %35, %37 : vector<1x128xf32>
    %39 = vector.extract_strided_slice %31 {offsets = [1, 0], sizes = [1, 128], strides = [1, 1]} : vector<4x128xf32> to vector<1x128xf32>
    %c1 = arith.constant 1 : index
    %40 = memref.load %arg4[%c1] : memref<8xf32, #tpu.memory_space<smem>>
    %41 = vector.broadcast %40 : f32 to vector<1x128xf32>
    %42 = arith.mulf %39, %41 : vector<1x128xf32>
    %43 = arith.addf %38, %42 : vector<1x128xf32>
    %44 = vector.extract_strided_slice %31 {offsets = [2, 0], sizes = [1, 128], strides = [1, 1]} : vector<4x128xf32> to vector<1x128xf32>
    %c2 = arith.constant 2 : index
    %45 = memref.load %arg4[%c2] : memref<8xf32, #tpu.memory_space<smem>>
    %46 = vector.broadcast %45 : f32 to vector<1x128xf32>
    %47 = arith.mulf %44, %46 : vector<1x128xf32>
    %48 = arith.addf %43, %47 : vector<1x128xf32>
    %49 = vector.extract_strided_slice %31 {offsets = [3, 0], sizes = [1, 128], strides = [1, 1]} : vector<4x128xf32> to vector<1x128xf32>
    %c3 = arith.constant 3 : index
    %50 = memref.load %arg4[%c3] : memref<8xf32, #tpu.memory_space<smem>>
    %51 = vector.broadcast %50 : f32 to vector<1x128xf32>
    %52 = arith.mulf %49, %51 : vector<1x128xf32>
    %53 = arith.addf %48, %52 : vector<1x128xf32>
    %cst_22 = arith.constant 0.000000e+00 : f32
    %54 = vector.broadcast %cst_22 : f32 to vector<1x128xf32>
    %55 = arith.cmpf oge, %53, %54 : vector<1x128xf32>
    %cst_23 = arith.constant 0.00999999977 : f32
    %56 = vector.broadcast %cst_23 : f32 to vector<1x128xf32>
    %57 = arith.mulf %56, %53 : vector<1x128xf32>
    %58 = arith.select %55, %53, %57 : vector<1x128xi1>, vector<1x128xf32>
    %c0_24 = arith.constant 0 : index
    %c0_25 = arith.constant 0 : index
    %59 = vector.load %arg8[%c0_24, %c0_25] : memref<1x128xf32, #tpu.memory_space<vmem>>, vector<1x128xf32>
    tpu.vector_store %arg8[%c0_24, %c0_25], %58 {strides = array<i32>} : memref<1x128xf32, #tpu.memory_space<vmem>>, vector<1x128xf32>,
    %c0_26 = arith.constant 0 : index
    %c0_27 = arith.constant 0 : index
    %60 = vector.load %arg8[%c0_26, %c0_27] : memref<1x128xf32, #tpu.memory_space<vmem>>, vector<1x128xf32>
    %c0_28 = arith.constant 0 : index
    %c0_29 = arith.constant 0 : index
    %61 = vector.load %arg5[%c0_28, %c0_29] : memref<128x128xf32, #tpu.memory_space<vmem>>, vector<128x128xf32>
    %cst_30 = arith.constant dense<0.000000e+00> : vector<1x128xf32>
    %62 = tpu.matmul %60, %61, %cst_30 {dimension_numbers = #tpu.dot_dimension_numbers<[1], [0], [0], [1], [0, 0, 1, 1], [], []>} : vector<1x128xf32>, vector<128x128xf32>, vector<1x128xf32> -> vector<1x128xf32>
    %c0_31 = arith.constant 0 : index
    %c0_32 = arith.constant 0 : index
    %63 = vector.load %arg6[%c0_31, %c0_32] : memref<1x128xf32, #tpu.memory_space<vmem>>, vector<1x128xf32>
    %64 = arith.addf %62, %63 : vector<1x128xf32>
    %c0_33 = arith.constant 0 : index
    %c0_34 = arith.constant 0 : index
    %c0_35 = arith.constant 0 : index
    %65 = vector.load %arg7[%c0_33, %c0_34, %c0_35] : memref<1x1x128xf32, #tpu.memory_space<vmem>>, vector<1x1x128xf32>
    %66 = vector.shape_cast %65 : vector<1x1x128xf32> to vector<1x128xf32>
    %67 = vector.shape_cast %64 : vector<1x128xf32> to vector<1x1x128xf32>
    tpu.vector_store %arg7[%c0_33, %c0_34, %c0_35], %67 {strides = array<i32>} : memref<1x1x128xf32, #tpu.memory_space<vmem>>, vector<1x1x128xf32>,
    return
  }
  func.func @transform_0(%arg0: i32) -> (i32, i32, i32, i32) {
    %c0_i32 = arith.constant 0 : i32
    %c0_i32_0 = arith.constant 0 : i32
    %c0_i32_1 = arith.constant 0 : i32
    %c0_i32_2 = arith.constant 0 : i32
    return %arg0, %c0_i32, %c0_i32_0, %c0_i32_1 : i32, i32, i32, i32
  }
  func.func @transform_1(%arg0: i32) -> (i32, i32) {
    %c0_i32 = arith.constant 0 : i32
    %c0_i32_0 = arith.constant 0 : i32
    %c0_i32_1 = arith.constant 0 : i32
    return %c0_i32, %c0_i32_0 : i32, i32
  }
  func.func @transform_2(%arg0: i32) -> (i32, i32) {
    %c0_i32 = arith.constant 0 : i32
    %c0_i32_0 = arith.constant 0 : i32
    %c0_i32_1 = arith.constant 0 : i32
    return %c0_i32, %c0_i32_0 : i32, i32
  }
  func.func @transform_3(%arg0: i32) -> i32 {
    %c0_i32 = arith.constant 0 : i32
    %c0_i32_0 = arith.constant 0 : i32
    return %c0_i32 : i32
  }
  func.func @transform_4(%arg0: i32) -> (i32, i32) {
    %c0_i32 = arith.constant 0 : i32
    %c0_i32_0 = arith.constant 0 : i32
    %c0_i32_1 = arith.constant 0 : i32
    return %c0_i32, %c0_i32_0 : i32, i32
  }
  func.func @transform_5(%arg0: i32) -> (i32, i32) {
    %c0_i32 = arith.constant 0 : i32
    %c0_i32_0 = arith.constant 0 : i32
    %c0_i32_1 = arith.constant 0 : i32
    return %c0_i32, %c0_i32_0 : i32, i32
  }
  func.func @transform_6(%arg0: i32) -> (i32, i32, i32) {
    %c0_i32 = arith.constant 0 : i32
    %c0_i32_0 = arith.constant 0 : i32
    %c0_i32_1 = arith.constant 0 : i32
    return %arg0, %c0_i32, %c0_i32_0 : i32, i32, i32
  }
}

</mosaic_0001>

<llo_original>
// kernel: tpu_custom_call.1
$region0: #{tpu_custom_call.1}
  #allocation0 [shape = 'u32[]', space=smem, size = 0x4, offset = 0x4, fixed_abs, tag = 'smem constant byte address 0x4 - core index']
  #allocation1 [shape = 'u32[144,128]{1,0:T(1,128)}', space=vmem, size = 0x12000, scoped, tag = 'internal scratch']
  #allocation2 [shape = 'f32[1,128]{1,0:T(1,128)}', space=vmem, size = 0x200, scoped, tag = 'scratch operand']
  %s0 = inlined_call_operand.hbm [shape: f32[2,1,32,128], index: 0, kind: input, shape index: {}]
  %s1 = inlined_call_operand.vmem [shape: f32[32,32], index: 1, kind: input, shape index: {}]
  %s2 = inlined_call_operand.vmem [shape: f32[32,1], index: 2, kind: input, shape index: {}]
  %s3 = inlined_call_operand.vmem [shape: f32[8], index: 3, kind: input, shape index: {}]
  %s4 = inlined_call_operand.hbm [shape: f32[128,128], index: 4, kind: input, shape index: {}]
  %s5 = inlined_call_operand.vmem [shape: f32[1,128], index: 5, kind: input, shape index: {}]
  %s6 = inlined_call_operand.hbm [shape: f32[2,1,128], index: 6, kind: output, shape index: {}]
  %s7 = sld [smem:[#allocation0]]
  $region69: #{tpu_custom_call.1} parent=0
    _
  %s9 = ssub.s32 1, %s7
  %s10 = scalar_select 0, %s9, %s7
  $region1: #{tpu_custom_call.1} parent=0
    #allocation3 [shape = 'u8[32768]{0}', space=vmem, size = 0x8000, scoped, tag = 'input window, operand 0']
    #allocation4 [shape = 's32[2]{0}', space=sflag, size = 0x8, scoped, tag = 'scoped memory for tpu_custom_call.1']
    #allocation5 [shape = 's32[2]{0}', space=sflag, size = 0x8, scoped, tag = 'scoped memory for tpu_custom_call.1']
    #allocation6 [shape = 's32[2]{0}', space=sflag, size = 0x8, scoped, tag = 'scoped memory for tpu_custom_call.1']
    #allocation7 [shape = 'u8[512]{0}', space=smem, size = 0x200, scoped, tag = 'input window, operand 3, single buffered']
    #allocation8 [shape = 'u8[65536]{0}', space=vmem, size = 0x10000, scoped, tag = 'input window, operand 4, single buffered']
    #allocation9 [shape = 's32[1]{0}', space=sflag, size = 0x4, scoped, tag = 'scoped memory for tpu_custom_call.1']
    #allocation10 [shape = 'u8[1024]{0}', space=vmem, size = 0x400, scoped, tag = 'output window, operand 0']
    %11 = vsyncpa [#allocation4], 0
    %s12 = scalar_lea.sflag [#allocation4], 1
    %13 = vsyncpa %s12, 0
    %14 = vsyncpa [#allocation6], 0
    %15 = vsyncpa [#allocation9], 0
    %16 = vsyncpa [#allocation5], 0
    %s17 = scalar_lea.sflag [#allocation5], 1
    %18 = vsyncpa %s17, 0
    loop: start=0, step=1, limit=4
    $region2: #{tpu_custom_call.1} parent=1 // loop_pre_header
      _
    $region3: #{tpu_custom_call.1} parent=1 // loop_header
      %s20 = sphi 0, %s24
      %p21 = scmp.ge.s32.totalorder %s20, 4
      %s30 = sphi 0, %s32
      %s33 = sphi 0, %s30
      %s34 = sphi 0, %s33
      %s50 = sphi 0, %s34
      %s54 = sphi 0, %s54
      %s56 = sphi 0, %s54
      %s57 = sphi 0, %s56
      %s71 = sphi 0, %s57
      %s75 = sphi 0, %s75
      %s77 = sphi 0, %s75
      %s78 = sphi 0, %s77
      %s92 = sphi 0, %s78
      %s96 = sphi 0, %s96
      %s98 = sphi 0, %s96
      %s99 = sphi 0, %s98
      %s113 = sphi 0, %s99
      %s117 = sphi 0, %s117
      %s119 = sphi 0, %s117
      %s120 = sphi 0, %s119
      %s134 = sphi 0, %s120
      %s138 = sphi 0, %s138
      %s140 = sphi 0, %s138
      %s141 = sphi 0, %s140
      %s155 = sphi 0, %s141
      %s161 = sphi 0, %s163
      %s164 = sphi 0, %s161
      %s165 = sphi 0, %s164
      %s181 = sphi 0, %s165
    $region4: #{tpu_custom_call.1} parent=1 // loop_header_branch
      %23 = sbr.rel (%p21) target = $region8
    $region5: #{tpu_custom_call.1} parent=1 // loop_body
      %s25 = ssub.s32 %s20, 1
      %s26 = ssub.s32 %s20, 2
      %s27 = sadd.s32 %s20, 1
      %s28 = ssub.s32 %s20, %s27
      %p29 = scmp.eq.s32.totalorder %s28, 0
      %s31 = sadd.s32 %s30, 1
      %s32 = scalar_select %p29, %s30, %s31
      %p35 = pneg %p29
      %p36 = scmp.eq.s32.totalorder %s20, 1
      %p37 = por %p35, %p36
      %p38 = scmp.ne.s32.totalorder %s30, %s33
      %p39 = scmp.eq.s32.totalorder %s20, 0
      %p40 = por %p38, %p39
      %p41 = scmp.ne.s32.totalorder %s30, %s33
      %p42 = scmp.eq.s32.totalorder %s25, 1
      %p43 = por %p41, %p42
      %p44 = scmp.ne.s32.totalorder %s33, %s34
      %p45 = scmp.eq.s32.totalorder %s25, 0
      %p46 = por %p44, %p45
      %p47 = scmp.ne.s32.totalorder %s33, %s34
      %p48 = scmp.eq.s32.totalorder %s26, 1
      %p49 = por %p47, %p48
      %p51 = scmp.ne.s32.totalorder %s34, %s50
      %p52 = scmp.eq.s32.totalorder %s26, 0
      %p53 = por %p51, %p52
      %s55 = sadd.s32 %s54, 1
      %p58 = scmp.eq.s32.totalorder %s20, 1
      %p59 = scmp.ne.s32.totalorder %s54, %s56
      %p60 = scmp.eq.s32.totalorder %s20, 0
      %p61 = por %p59, %p60
      %p62 = scmp.ne.s32.totalorder %s54, %s56
      %p63 = scmp.eq.s32.totalorder %s25, 1
      %p64 = por %p62, %p63
      %p65 = scmp.ne.s32.totalorder %s56, %s57
      %p66 = scmp.eq.s32.totalorder %s25, 0
      %p67 = por %p65, %p66
      %p68 = scmp.ne.s32.totalorder %s56, %s57
      %p69 = scmp.eq.s32.totalorder %s26, 1
      %p70 = por %p68, %p69
      %p72 = scmp.ne.s32.totalorder %s57, %s71
      %p73 = scmp.eq.s32.totalorder %s26, 0
      %p74 = por %p72, %p73
      %s76 = sadd.s32 %s75, 1
      %p79 = scmp.eq.s32.totalorder %s20, 1
      %p80 = scmp.ne.s32.totalorder %s75, %s77
      %p81 = scmp.eq.s32.totalorder %s20, 0
      %p82 = por %p80, %p81
      %p83 = scmp.ne.s32.totalorder %s75, %s77
      %p84 = scmp.eq.s32.totalorder %s25, 1
      %p85 = por %p83, %p84
      %p86 = scmp.ne.s32.totalorder %s77, %s78
      %p87 = scmp.eq.s32.totalorder %s25, 0
      %p88 = por %p86, %p87
      %p89 = scmp.ne.s32.totalorder %s77, %s78
      %p90 = scmp.eq.s32.totalorder %s26, 1
      %p91 = por %p89, %p90
      %p93 = scmp.ne.s32.totalorder %s78, %s92
      %p94 = scmp.eq.s32.totalorder %s26, 0
      %p95 = por %p93, %p94
      %s97 = sadd.s32 %s96, 1
      %p100 = scmp.eq.s32.totalorder %s20, 1
      %p101 = scmp.ne.s32.totalorder %s96, %s98
      %p102 = scmp.eq.s32.totalorder %s20, 0
      %p103 = por %p101, %p102
      %p104 = scmp.ne.s32.totalorder %s96, %s98
      %p105 = scmp.eq.s32.totalorder %s25, 1
      %p106 = por %p104, %p105
      %p107 = scmp.ne.s32.totalorder %s98, %s99
      %p108 = scmp.eq.s32.totalorder %s25, 0
      %p109 = por %p107, %p108
      %p110 = scmp.ne.s32.totalorder %s98, %s99
      %p111 = scmp.eq.s32.totalorder %s26, 1
      %p112 = por %p110, %p111
      %p114 = scmp.ne.s32.totalorder %s99, %s113
      %p115 = scmp.eq.s32.totalorder %s26, 0
      %p116 = por %p114, %p115
      %s118 = sadd.s32 %s117, 1
      %p121 = scmp.eq.s32.totalorder %s20, 1
      %p122 = scmp.ne.s32.totalorder %s117, %s119
      %p123 = scmp.eq.s32.totalorder %s20, 0
      %p124 = por %p122, %p123
      %p125 = scmp.ne.s32.totalorder %s117, %s119
      %p126 = scmp.eq.s32.totalorder %s25, 1
      %p127 = por %p125, %p126
      %p128 = scmp.ne.s32.totalorder %s119, %s120
      %p129 = scmp.eq.s32.totalorder %s25, 0
      %p130 = por %p128, %p129
      %p131 = scmp.ne.s32.totalorder %s119, %s120
      %p132 = scmp.eq.s32.totalorder %s26, 1
      %p133 = por %p131, %p132
      %p135 = scmp.ne.s32.totalorder %s120, %s134
      %p136 = scmp.eq.s32.totalorder %s26, 0
      %p137 = por %p135, %p136
      %s139 = sadd.s32 %s138, 1
      %p142 = scmp.eq.s32.totalorder %s20, 1
      %p143 = scmp.ne.s32.totalorder %s138, %s140
      %p144 = scmp.eq.s32.totalorder %s20, 0
      %p145 = por %p143, %p144
      %p146 = scmp.ne.s32.totalorder %s138, %s140
      %p147 = scmp.eq.s32.totalorder %s25, 1
      %p148 = por %p146, %p147
      %p149 = scmp.ne.s32.totalorder %s140, %s141
      %p150 = scmp.eq.s32.totalorder %s25, 0
      %p151 = por %p149, %p150
      %p152 = scmp.ne.s32.totalorder %s140, %s141
      %p153 = scmp.eq.s32.totalorder %s26, 1
      %p154 = por %p152, %p153
      %p156 = scmp.ne.s32.totalorder %s141, %s155
      %p157 = scmp.eq.s32.totalorder %s26, 0
      %p158 = por %p156, %p157
      %s159 = ssub.s32 %s20, %s27
      %p160 = scmp.eq.s32.totalorder %s159, 0
      %s162 = sadd.s32 %s161, 1
      %s163 = scalar_select %p160, %s161, %s162
      %p166 = pneg %p160
      %p167 = scmp.eq.s32.totalorder %s20, 1
      %p168 = por %p166, %p167
      %p169 = scmp.ne.s32.totalorder %s161, %s164
      %p170 = scmp.eq.s32.totalorder %s20, 0
      %p171 = por %p169, %p170
      %p172 = scmp.ne.s32.totalorder %s161, %s164
      %p173 = scmp.eq.s32.totalorder %s25, 1
      %p174 = por %p172, %p173
      %p175 = scmp.ne.s32.totalorder %s164, %s165
      %p176 = scmp.eq.s32.totalorder %s25, 0
      %p177 = por %p175, %p176
      %p178 = scmp.ne.s32.totalorder %s164, %s165
      %p179 = scmp.eq.s32.totalorder %s26, 1
      %p180 = por %p178, %p179
      %p182 = scmp.ne.s32.totalorder %s165, %s181
      %p183 = scmp.eq.s32.totalorder %s26, 0
      %p184 = por %p182, %p183
      %p185 = scmp.le.s32.totalorder 1, %s20
      %p186 = scmp.lt.s32.totalorder %s20, 3
      %p187 = pnand %p185, %p186
      %p188 = pneg %p187
      // Predicated region
      $region9: #{tpu_custom_call.1} parent=5 // pred_check
        _
      $region10: #{tpu_custom_call.1} parent=5 // pred_check_branch
        %190 = sbr.rel (%p187) target = $region12
      $region11: #{tpu_custom_call.1} parent=5 // pred_region
        %s191 = ssub.s32 %s20, 1
        // Predicated region
        $region13: #{tpu_custom_call.1} parent=11 // pred_check
          %p192 = pneg %p67
        $region14: #{tpu_custom_call.1} parent=11 // pred_check_branch
          %194 = sbr.rel (%p192) target = $region16
        $region15: #{tpu_custom_call.1} parent=11 // pred_region
          _
        $region16: #{tpu_custom_call.1} parent=11 // pred_fallthru
          _
        // Predicated region
        $region17: #{tpu_custom_call.1} parent=11 // pred_check
          %p195 = pneg %p88
        $region18: #{tpu_custom_call.1} parent=11 // pred_check_branch
          %197 = sbr.rel (%p195) target = $region20
        $region19: #{tpu_custom_call.1} parent=11 // pred_region
          _
        $region20: #{tpu_custom_call.1} parent=11 // pred_fallthru
          _
        // Predicated region
        $region21: #{tpu_custom_call.1} parent=11 // pred_check
          %p198 = pneg %p109
        $region22: #{tpu_custom_call.1} parent=11 // pred_check_branch
          %200 = sbr.rel (%p198) target = $region24
        $region23: #{tpu_custom_call.1} parent=11 // pred_region
          %s202 = ssub.s32 16, 16
          %203 = vsyncadd [#allocation6], %s202
          %s205 = sshll.u32 %s3, 4
          %s206 = int_to_ptr.vmem [resolvable:$true] %s205
          %208 = dma.vmem_to_smem %s206, 16, [#allocation7], [#allocation6]
        $region24: #{tpu_custom_call.1} parent=11 // pred_fallthru
          _
        // Predicated region
        $region25: #{tpu_custom_call.1} parent=11 // pred_check
          %p209 = pneg %p130
        $region26: #{tpu_custom_call.1} parent=11 // pred_check_branch
          %211 = sbr.rel (%p209) target = $region28
        $region27: #{tpu_custom_call.1} parent=11 // pred_region
          %s213 = ssub.s32 2048, 2048
          %214 = vsyncadd [#allocation9], %s213
          %s215 = sshll.u32 [#allocation8], 4
          %s216 = int_to_ptr.vmem [resolvable:$true] %s215
          %221 = dma.hbm_to_vmem [thread:$0]  %s4, 2048, %s216, [#allocation9], 128, 128, 8
        $region28: #{tpu_custom_call.1} parent=11 // pred_fallthru
          _
        // Predicated region
        $region29: #{tpu_custom_call.1} parent=11 // pred_check
          %p222 = pneg %p151
        $region30: #{tpu_custom_call.1} parent=11 // pred_check_branch
          %224 = sbr.rel (%p222) target = $region32
        $region31: #{tpu_custom_call.1} parent=11 // pred_region
          _
        $region32: #{tpu_custom_call.1} parent=11 // pred_fallthru
          _
      $region12: #{tpu_custom_call.1} parent=5 // pred_fallthru
        _
      %p225 = scmp.lt.s32.totalorder %s20, 2
      // Predicated region
      $region33: #{tpu_custom_call.1} parent=5 // pred_check
        %p226 = pneg %p225
      $region34: #{tpu_custom_call.1} parent=5 // pred_check_branch
        %228 = sbr.rel (%p226) target = $region36
      $region35: #{tpu_custom_call.1} parent=5 // pred_region
        // Predicated region
        $region37: #{tpu_custom_call.1} parent=35 // pred_check
          %p229 = pneg %p40
        $region38: #{tpu_custom_call.1} parent=35 // pred_check_branch
          %231 = sbr.rel (%p229) target = $region40
        $region39: #{tpu_custom_call.1} parent=35 // pred_region
          %s232 = sand.u32 %s30, 1
          %s233 = scalar_lea.sflag [#allocation4], %s232
          %s234 = sand.u32 %s30, 1
          %s235 = smul.addr %s234, 32
          %s236 = scalar_lea.vmem [#allocation3], %s235
          %s238 = ssub.s32 512, 512
          %239 = vsyncadd %s233, %s238
          %s240 = smul.addr %s20, 4
          %s241 = smul.addr %s240, 128
          %s242 = scalar_lea.hbm %s0, %s241
          %s243 = sshll.u32 %s236, 4
          %s244 = int_to_ptr.vmem [resolvable:$true] %s243
          %249 = dma.hbm_to_vmem [thread:$0]  %s242, 512, %s244, %s233, 128, 128, 8
        $region40: #{tpu_custom_call.1} parent=35 // pred_fallthru
          _
      $region36: #{tpu_custom_call.1} parent=5 // pred_fallthru
        _
      %p250 = scmp.le.s32.totalorder 1, %s20
      %p251 = scmp.lt.s32.totalorder %s20, 3
      %p252 = pnand %p250, %p251
      %p253 = pneg %p252
      // Predicated region
      $region41: #{tpu_custom_call.1} parent=5 // pred_check
        _
      $region42: #{tpu_custom_call.1} parent=5 // pred_check_branch
        %255 = sbr.rel (%p252) target = $region44
      $region43: #{tpu_custom_call.1} parent=5 // pred_region
        %s256 = ssub.s32 %s20, 1
        %s257 = sand.u32 %s33, 1
        %s258 = scalar_lea.sflag [#allocation4], %s257
        %s259 = sand.u32 %s33, 1
        %s260 = smul.addr %s259, 32
        %s261 = scalar_lea.vmem [#allocation3], %s260
        // Predicated region
        $region45: #{tpu_custom_call.1} parent=43 // pred_check
          %p262 = pneg %p46
        $region46: #{tpu_custom_call.1} parent=43 // pred_check_branch
          %264 = sbr.rel (%p262) target = $region48
        $region47: #{tpu_custom_call.1} parent=43 // pred_region
          %265 = dma.done %s258, 512
        $region48: #{tpu_custom_call.1} parent=43 // pred_fallthru
          _
        // Predicated region
        $region49: #{tpu_custom_call.1} parent=43 // pred_check
          %p266 = pneg %p109
        $region50: #{tpu_custom_call.1} parent=43 // pred_check_branch
          %268 = sbr.rel (%p266) target = $region52
        $region51: #{tpu_custom_call.1} parent=43 // pred_region
          %269 = dma.done [#allocation6], 16
        $region52: #{tpu_custom_call.1} parent=43 // pred_fallthru
          _
        // Predicated region
        $region53: #{tpu_custom_call.1} parent=43 // pred_check
          %p270 = pneg %p130
        $region54: #{tpu_custom_call.1} parent=43 // pred_check_branch
          %272 = sbr.rel (%p270) target = $region56
        $region55: #{tpu_custom_call.1} parent=43 // pred_region
          %273 = dma.done [#allocation9], 2048
        $region56: #{tpu_custom_call.1} parent=43 // pred_fallthru
          _
        %274 = sfence
        %s275 = sand.u32 %s33, 1
        %s276 = scalar_lea.sflag [#allocation4], %s275
        %s277 = sand.u32 %s33, 1
        %s278 = smul.addr %s277, 32
        %s279 = scalar_lea.vmem [#allocation3], %s278
        %p280 = pneg %p46
        %p281 = pneg %p43
        %p282 = pneg %p67
        %p283 = pneg %p64
        %p284 = pneg %p88
        %p285 = pneg %p85
        %p286 = pneg %p109
        %p287 = pneg %p106
        %p288 = pneg %p130
        %p289 = pneg %p127
        %p290 = pneg %p151
        %p291 = pneg %p148
        %p292 = pneg %p177
        %p293 = pneg %p174
        %s294 = sand.u32 %s164, 1
        %s295 = scalar_lea.sflag [#allocation5], %s294
        %s296 = sand.u32 %s164, 1
        %s297 = scalar_lea.vmem [#allocation10], %s296
        %v298 = vld [vmem:[%s1] sm:$0xff]
        %v299 = vld [vmem:[%s1 + $0x8] sm:$0xff]
        %v300 = vld [vmem:[%s1 + $0x10] sm:$0xff]
        %v301 = vld [vmem:[%s1 + $0x18] sm:$0xf]
        %v302 = vld [vmem:[%s2] sm:$0xff]
        %v303 = vld [vmem:[%s2 + $0x8] sm:$0xff]
        %v304 = vld [vmem:[%s2 + $0x10] sm:$0xff]
        %v305 = vld [vmem:[%s2 + $0x18] sm:$0xf]
        %v306 = vld [vmem:[%s261] sm:$0xff]
        %v307 = vld [vmem:[%s261 + $0x8] sm:$0xff]
        %v308 = vld [vmem:[%s261 + $0x10] sm:$0xff]
        %v309 = vld [vmem:[%s261 + $0x18] sm:$0xff]
        %311 = vset.pattern.permute.xlu0 0
        %312 = vperm.xlu0 %311, %v302
        %v313 = vpop.permute.xlu0 %312
        %316 = vset.pattern.permute.xlu0 0
        %317 = vperm.xlu0 %316, %v303
        %v318 = vpop.permute.xlu0 %317
        %vm320 = vcmask 261120
        %v322 = vsel %vm320, %v298, 0
        %v325 = vsel %vm320, %v299, 0
        %327 = vmatprep.subr.mxu0 0.0
        %328 = vmatpush1.msra.mxu0 0.0
        %329 = vmatprep.subr.mxu0 0.0
        %330 = vmatpush1.msra.mxu0 0.0
        %331 = vmatprep.subr.mxu0 0.0
        %332 = vmatpush1.msra.mxu0 0.0
        %333 = vmatprep.subr.mxu0 0.0
        %334 = vmatpush1.msra.mxu0 0.0
        %335 = vmatprep.subr.mxu0 0.0
        %336 = vmatpush1.msra.mxu0 0.0
        %337 = vmatprep.subr.mxu0 0.0
        %338 = vmatpush1.msra.mxu0 0.0
        %339 = vmatprep.subr.mxu0 0.0
        %340 = vmatpush1.msra.mxu0 0.0
        %341 = vmatprep.subr.mxu0 0.0
        %342 = vmatpush1.msra.mxu0 0.0
        %343 = vmatprep.subr.mxu0 0.0
        %344 = vmatpush1.msra.mxu0 0.0
        %345 = vmatprep.subr.mxu0 0.0
        %346 = vmatpush1.msra.mxu0 0.0
        %347 = vmatprep.subr.mxu0 0.0
        %348 = vmatpush1.msra.mxu0 0.0
        %349 = vmatprep.subr.mxu0 0.0
        %350 = vmatpush1.msra.mxu0 0.0
        %351 = vmatprep.subr.mxu0 0.0
        %352 = vmatpush1.msra.mxu0 %v309
        %353 = vmatprep.subr.mxu0 0.0
        %354 = vmatpush1.msra.mxu0 %v308
        %355 = vmatprep.subr.mxu0 0.0
        %356 = vmatpush1.msra.mxu0 %v307
        %357 = vmatprep.subr.mxu0 0.0
        %358 = vmatpush1.msra.mxu0 %v306
        %359 = vmatprep.subr.mxu0 0.0
        %360 = vmatpush2.msra.mxu0 0.0
        %361 = vmatprep.subr.mxu0 0.0
        %362 = vmatpush2.msra.mxu0 0.0
        %363 = vmatprep.subr.mxu0 0.0
        %364 = vmatpush2.msra.mxu0 0.0
        %365 = vmatprep.subr.mxu0 0.0
        %366 = vmatpush2.msra.mxu0 0.0
        %367 = vmatprep.subr.mxu0 0.0
        %368 = vmatpush2.msra.mxu0 0.0
        %369 = vmatprep.subr.mxu0 0.0
        %370 = vmatpush2.msra.mxu0 0.0
        %371 = vmatprep.subr.mxu0 0.0
        %372 = vmatpush2.msra.mxu0 0.0
        %373 = vmatprep.subr.mxu0 0.0
        %374 = vmatpush2.msra.mxu0 0.0
        %375 = vmatprep.subr.mxu0 0.0
        %376 = vmatpush2.msra.mxu0 0.0
        %377 = vmatprep.subr.mxu0 0.0
        %378 = vmatpush2.msra.mxu0 0.0
        %379 = vmatprep.subr.mxu0 0.0
        %380 = vmatpush2.msra.mxu0 0.0
        %381 = vmatprep.subr.mxu0 0.0
        %382 = vmatpush2.msra.mxu0 0.0
        %383 = vmatprep.subr.mxu0 0.0
        %384 = vmatpush2.msra.mxu0 0.0
        %385 = vmatprep.subr.mxu0 0.0
        %386 = vmatpush2.msra.mxu0 0.0
        %387 = vmatprep.subr.mxu0 0.0
        %388 = vmatpush2.msra.mxu0 0.0
        %389 = vmatprep.subr.mxu0 0.0
        %390 = vmatpush2.msra.mxu0 0.0
        %391 = vmatprep.mubr.f32.mxu0 0.0
        %392 = vmatmul.mubr.f32.gmra.mxu0 %v322
        %v393 = vpop.f32.mrf.mxu0
        %v394 = vadd.f32 %v313, %v393
        %v395 = vpop.f32.mrf.mxu0
        %396 = vmatprep.mubr.f32.mxu0 0.0
        %397 = vmatmul.mubr.f32.gmra.mxu0 %v325
        %v398 = vpop.f32.mrf.mxu0
        %v399 = vadd.f32 %v318, %v398
        %v400 = vpop.f32.mrf.mxu0
        %401 = vdwg.mxu0
        %vm402 = vcmp.ge.f32.partialorder %v394, 0.0
        %vm403 = vcmp.ge.f32.partialorder %v399, 0.0
        %v404 = vmul.f32 %v394, 0.1
        %v405 = vmul.f32 %v399, 0.1
        %v406 = vsel %vm402, %v394, %v404
        %v407 = vsel %vm403, %v399, %v405
        %409 = vset.pattern.permute.xlu0 0
        %410 = vperm.xlu0 %409, %v304
        %v411 = vpop.permute.xlu0 %410
        %vm413 = vcmask 130048
        %v415 = vsel %vm413, %v300, 0
        %417 = vmatprep.subr.mxu0 0.0
        %418 = vmatpush1.msra.mxu0 0.0
        %419 = vmatprep.subr.mxu0 0.0
        %420 = vmatpush1.msra.mxu0 0.0
        %421 = vmatprep.subr.mxu0 0.0
        %422 = vmatpush1.msra.mxu0 0.0
        %423 = vmatprep.subr.mxu0 0.0
        %424 = vmatpush1.msra.mxu0 0.0
        %425 = vmatprep.subr.mxu0 0.0
        %426 = vmatpush1.msra.mxu0 0.0
        %427 = vmatprep.subr.mxu0 0.0
        %428 = vmatpush1.msra.mxu0 0.0
        %429 = vmatprep.subr.mxu0 0.0
        %430 = vmatpush1.msra.mxu0 0.0
        %431 = vmatprep.subr.mxu0 0.0
        %432 = vmatpush1.msra.mxu0 0.0
        %433 = vmatprep.subr.mxu0 0.0
        %434 = vmatpush1.msra.mxu0 0.0
        %435 = vmatprep.subr.mxu0 0.0
        %436 = vmatpush1.msra.mxu0 0.0
        %437 = vmatprep.subr.mxu0 0.0
        %438 = vmatpush1.msra.mxu0 0.0
        %439 = vmatprep.subr.mxu0 0.0
        %440 = vmatpush1.msra.mxu0 0.0
        %441 = vmatprep.subr.mxu0 0.0
        %442 = vmatpush1.msra.mxu0 0.0
        %443 = vmatprep.subr.mxu0 0.0
        %444 = vmatpush1.msra.mxu0 0.0
        %445 = vmatprep.subr.mxu0 0.0
        %446 = vmatpush1.msra.mxu0 %v407
        %447 = vmatprep.subr.mxu0 0.0
        %448 = vmatpush1.msra.mxu0 %v406
        %449 = vmatprep.subr.mxu0 0.0
        %450 = vmatpush2.msra.mxu0 0.0
        %451 = vmatprep.subr.mxu0 0.0
        %452 = vmatpush2.msra.mxu0 0.0
        %453 = vmatprep.subr.mxu0 0.0
        %454 = vmatpush2.msra.mxu0 0.0
        %455 = vmatprep.subr.mxu0 0.0
        %456 = vmatpush2.msra.mxu0 0.0
        %457 = vmatprep.subr.mxu0 0.0
        %458 = vmatpush2.msra.mxu0 0.0
        %459 = vmatprep.subr.mxu0 0.0
        %460 = vmatpush2.msra.mxu0 0.0
        %461 = vmatprep.subr.mxu0 0.0
        %462 = vmatpush2.msra.mxu0 0.0
        %463 = vmatprep.subr.mxu0 0.0
        %464 = vmatpush2.msra.mxu0 0.0
        %465 = vmatprep.subr.mxu0 0.0
        %466 = vmatpush2.msra.mxu0 0.0
        %467 = vmatprep.subr.mxu0 0.0
        %468 = vmatpush2.msra.mxu0 0.0
        %469 = vmatprep.subr.mxu0 0.0
        %470 = vmatpush2.msra.mxu0 0.0
        %471 = vmatprep.subr.mxu0 0.0
        %472 = vmatpush2.msra.mxu0 0.0
        %473 = vmatprep.subr.mxu0 0.0
        %474 = vmatpush2.msra.mxu0 0.0
        %475 = vmatprep.subr.mxu0 0.0
        %476 = vmatpush2.msra.mxu0 0.0
        %477 = vmatprep.subr.mxu0 0.0
        %478 = vmatpush2.msra.mxu0 0.0
        %479 = vmatprep.subr.mxu0 0.0
        %480 = vmatpush2.msra.mxu0 0.0
        %481 = vmatprep.mubr.f32.mxu0 0.0
        %482 = vmatmul.mubr.f32.gmra.mxu0 %v415
        %v483 = vpop.f32.mrf.mxu0
        %v484 = vadd.f32 %v411, %v483
        %v485 = vpop.f32.mrf.mxu0
        %486 = vdwg.mxu0
        %vm487 = vcmp.ge.f32.partialorder %v484, 0.0
        %v488 = vmul.f32 %v484, 0.1
        %v489 = vsel %vm487, %v484, %v488
        %491 = vset.pattern.permute.xlu0 0
        %492 = vperm.xlu0 %491, %v305
        %v493 = vpop.permute.xlu0 %492
        %vm495 = vcmask 64512
        %v497 = vsel %vm495, %v301, 0
        %499 = vmatprep.subr.mxu0 0.0
        %500 = vmatpush1.msra.mxu0 0.0
        %501 = vmatprep.subr.mxu0 0.0
        %502 = vmatpush1.msra.mxu0 0.0
        %503 = vmatprep.subr.mxu0 0.0
        %504 = vmatpush1.msra.mxu0 0.0
        %505 = vmatprep.subr.mxu0 0.0
        %506 = vmatpush1.msra.mxu0 0.0
        %507 = vmatprep.subr.mxu0 0.0
        %508 = vmatpush1.msra.mxu0 0.0
        %509 = vmatprep.subr.mxu0 0.0
        %510 = vmatpush1.msra.mxu0 0.0
        %511 = vmatprep.subr.mxu0 0.0
        %512 = vmatpush1.msra.mxu0 0.0
        %513 = vmatprep.subr.mxu0 0.0
        %514 = vmatpush1.msra.mxu0 0.0
        %515 = vmatprep.subr.mxu0 0.0
        %516 = vmatpush1.msra.mxu0 0.0
        %517 = vmatprep.subr.mxu0 0.0
        %518 = vmatpush1.msra.mxu0 0.0
        %519 = vmatprep.subr.mxu0 0.0
        %520 = vmatpush1.msra.mxu0 0.0
        %521 = vmatprep.subr.mxu0 0.0
        %522 = vmatpush1.msra.mxu0 0.0
        %523 = vmatprep.subr.mxu0 0.0
        %524 = vmatpush1.msra.mxu0 0.0
        %525 = vmatprep.subr.mxu0 0.0
        %526 = vmatpush1.msra.mxu0 0.0
        %527 = vmatprep.subr.mxu0 0.0
        %528 = vmatpush1.msra.mxu0 0.0
        %529 = vmatprep.subr.mxu0 0.0
        %530 = vmatpush1.msra.mxu0 %v489
        %531 = vmatprep.subr.mxu0 0.0
        %532 = vmatpush2.msra.mxu0 0.0
        %533 = vmatprep.subr.mxu0 0.0
        %534 = vmatpush2.msra.mxu0 0.0
        %535 = vmatprep.subr.mxu0 0.0
        %536 = vmatpush2.msra.mxu0 0.0
        %537 = vmatprep.subr.mxu0 0.0
        %538 = vmatpush2.msra.mxu0 0.0
        %539 = vmatprep.subr.mxu0 0.0
        %540 = vmatpush2.msra.mxu0 0.0
        %541 = vmatprep.subr.mxu0 0.0
        %542 = vmatpush2.msra.mxu0 0.0
        %543 = vmatprep.subr.mxu0 0.0
        %544 = vmatpush2.msra.mxu0 0.0
        %545 = vmatprep.subr.mxu0 0.0
        %546 = vmatpush2.msra.mxu0 0.0
        %547 = vmatprep.subr.mxu0 0.0
        %548 = vmatpush2.msra.mxu0 0.0
        %549 = vmatprep.subr.mxu0 0.0
        %550 = vmatpush2.msra.mxu0 0.0
        %551 = vmatprep.subr.mxu0 0.0
        %552 = vmatpush2.msra.mxu0 0.0
        %553 = vmatprep.subr.mxu0 0.0
        %554 = vmatpush2.msra.mxu0 0.0
        %555 = vmatprep.subr.mxu0 0.0
        %556 = vmatpush2.msra.mxu0 0.0
        %557 = vmatprep.subr.mxu0 0.0
        %558 = vmatpush2.msra.mxu0 0.0
        %559 = vmatprep.subr.mxu0 0.0
        %560 = vmatpush2.msra.mxu0 0.0
        %561 = vmatprep.subr.mxu0 0.0
        %562 = vmatpush2.msra.mxu0 0.0
        %563 = vmatprep.mubr.f32.mxu0 0.0
        %564 = vmatmul.mubr.f32.gmra.mxu0 %v497
        %v565 = vpop.f32.mrf.mxu0
        %v566 = vadd.f32 %v493, %v565
        %v567 = vpop.f32.mrf.mxu0
        %568 = vdwg.mxu0
        %vm569 = vcmp.ge.f32.partialorder %v566, 0.0
        %v570 = vmul.f32 %v566, 0.1
        %v571 = vsel %vm569, %v566, %v570
        %s572 = sld [smem:[#allocation7]]
        %v573 = vstv %s572
        %v574 = vmul.f32 %v571, %v573
        %s575 = sld [smem:[#allocation7 + $0x4]]
        %v576 = vstv %s575
        %v577 = vadd.f32 %v574, %v576
        %s578 = sld [smem:[#allocation7 + $0x1]]
        %v579 = vstv %s578
        %v580 = vmul.f32 %v571, %v579
        %v582 = vrot.slane %v580, 1
        %v584 = vadd.f32 %v577, %v582
        %s585 = sld [smem:[#allocation7 + $0x2]]
        %v586 = vstv %s585
        %v587 = vmul.f32 %v571, %v586
        %v589 = vrot.slane %v587, 2
        %v591 = vadd.f32 %v584, %v589
        %s592 = sld [smem:[#allocation7 + $0x3]]
        %v593 = vstv %s592
        %v594 = vmul.f32 %v571, %v593
        %v596 = vrot.slane %v594, 3
        %v598 = vadd.f32 %v591, %v596
        %vm599 = vcmp.ge.f32.partialorder %v598, 0.0
        %v600 = vmul.f32 %v598, 0.01
        %v601 = vsel %vm599, %v598, %v600
        %602 = vst [vmem:[#allocation2] sm:$0x1] %v601
        %v603 = vld [vmem:[#allocation2] sm:$0x1]
        %v604 = vld [vmem:[#allocation8] sm:$0xff]
        %v605 = vld [vmem:[#allocation8 + $0x8] sm:$0xff]
        %v606 = vld [vmem:[#allocation8 + $0x10] sm:$0xff]
        %v607 = vld [vmem:[#allocation8 + $0x18] sm:$0xff]
        %v608 = vld [vmem:[#allocation8 + $0x20] sm:$0xff]
        %v609 = vld [vmem:[#allocation8 + $0x28] sm:$0xff]
        %v610 = vld [vmem:[#allocation8 + $0x30] sm:$0xff]
        %v611 = vld [vmem:[#allocation8 + $0x38] sm:$0xff]
        %v612 = vld [vmem:[#allocation8 + $0x40] sm:$0xff]
        %v613 = vld [vmem:[#allocation8 + $0x48] sm:$0xff]
        %v614 = vld [vmem:[#allocation8 + $0x50] sm:$0xff]
        %v615 = vld [vmem:[#allocation8 + $0x58] sm:$0xff]
        %v616 = vld [vmem:[#allocation8 + $0x60] sm:$0xff]
        %v617 = vld [vmem:[#allocation8 + $0x68] sm:$0xff]
        %v618 = vld [vmem:[#allocation8 + $0x70] sm:$0xff]
        %v619 = vld [vmem:[#allocation8 + $0x78] sm:$0xff]
        %v620 = vld [vmem:[%s5] sm:$0x1]
        %621 = vmatprep.subr.mxu0 0.0
        %622 = vmatpush1.msra.mxu0 %v619
        %623 = vmatprep.subr.mxu0 0.0
        %624 = vmatpush1.msra.mxu0 %v618
        %625 = vmatprep.subr.mxu0 0.0
        %626 = vmatpush1.msra.mxu0 %v617
        %627 = vmatprep.subr.mxu0 0.0
        %628 = vmatpush1.msra.mxu0 %v616
        %629 = vmatprep.subr.mxu0 0.0
        %630 = vmatpush1.msra.mxu0 %v615
        %631 = vmatprep.subr.mxu0 0.0
        %632 = vmatpush1.msra.mxu0 %v614
        %633 = vmatprep.subr.mxu0 0.0
        %634 = vmatpush1.msra.mxu0 %v613
        %635 = vmatprep.subr.mxu0 0.0
        %636 = vmatpush1.msra.mxu0 %v612
        %637 = vmatprep.subr.mxu0 0.0
        %638 = vmatpush1.msra.mxu0 %v611
        %639 = vmatprep.subr.mxu0 0.0
        %640 = vmatpush1.msra.mxu0 %v610
        %641 = vmatprep.subr.mxu0 0.0
        %642 = vmatpush1.msra.mxu0 %v609
        %643 = vmatprep.subr.mxu0 0.0
        %644 = vmatpush1.msra.mxu0 %v608
        %645 = vmatprep.subr.mxu0 0.0
        %646 = vmatpush1.msra.mxu0 %v607
        %647 = vmatprep.subr.mxu0 0.0
        %648 = vmatpush1.msra.mxu0 %v606
        %649 = vmatprep.subr.mxu0 0.0
        %650 = vmatpush1.msra.mxu0 %v605
        %651 = vmatprep.subr.mxu0 0.0
        %652 = vmatpush1.msra.mxu0 %v604
        %653 = vmatprep.subr.mxu0 0.0
        %654 = vmatpush2.msra.mxu0 0.0
        %655 = vmatprep.subr.mxu0 0.0
        %656 = vmatpush2.msra.mxu0 0.0
        %657 = vmatprep.subr.mxu0 0.0
        %658 = vmatpush2.msra.mxu0 0.0
        %659 = vmatprep.subr.mxu0 0.0
        %660 = vmatpush2.msra.mxu0 0.0
        %661 = vmatprep.subr.mxu0 0.0
        %662 = vmatpush2.msra.mxu0 0.0
        %663 = vmatprep.subr.mxu0 0.0
        %664 = vmatpush2.msra.mxu0 0.0
        %665 = vmatprep.subr.mxu0 0.0
        %666 = vmatpush2.msra.mxu0 0.0
        %667 = vmatprep.subr.mxu0 0.0
        %668 = vmatpush2.msra.mxu0 0.0
        %669 = vmatprep.subr.mxu0 0.0
        %670 = vmatpush2.msra.mxu0 0.0
        %671 = vmatprep.subr.mxu0 0.0
        %672 = vmatpush2.msra.mxu0 0.0
        %673 = vmatprep.subr.mxu0 0.0
        %674 = vmatpush2.msra.mxu0 0.0
        %675 = vmatprep.subr.mxu0 0.0
        %676 = vmatpush2.msra.mxu0 0.0
        %677 = vmatprep.subr.mxu0 0.0
        %678 = vmatpush2.msra.mxu0 0.0
        %679 = vmatprep.subr.mxu0 0.0
        %680 = vmatpush2.msra.mxu0 0.0
        %681 = vmatprep.subr.mxu0 0.0
        %682 = vmatpush2.msra.mxu0 0.0
        %683 = vmatprep.subr.mxu0 0.0
        %684 = vmatpush2.msra.mxu0 0.0
        %685 = vmatprep.mubr.f32.mxu0 0.0
        %686 = vmatmul.mubr.f32.gmra.mxu0 %v603
        %v687 = vpop.f32.mrf.mxu0
        %v688 = vadd.f32 %v620, %v687
        %v689 = vpop.f32.mrf.mxu0
        %690 = vdwg.mxu0
        %691 = vst [vmem:[%s297] sm:$0x1] %v688
        %s692 = sand.u32 %s164, 1
        %s693 = scalar_lea.sflag [#allocation5], %s692
        %s694 = sand.u32 %s164, 1
        %s695 = scalar_lea.vmem [#allocation10], %s694
        // Predicated region
        $region57: #{tpu_custom_call.1} parent=43 // pred_check
          %p696 = pneg %p174
        $region58: #{tpu_custom_call.1} parent=43 // pred_check_branch
          %698 = sbr.rel (%p696) target = $region60
        $region59: #{tpu_custom_call.1} parent=43 // pred_region
          %s700 = ssub.s32 16, 16
          %701 = vsyncadd %s693, %s700
          %s702 = smul.addr %s25, 16
          %s703 = scalar_lea.hbm %s6, %s702
          %s705 = sshll.u32 %s695, 4
          %s706 = int_to_ptr.vmem [resolvable:$true] %s705
          %708 = dma.vmem_to_hbm [thread:$0]  %s706, 16, %s703, %s693
        $region60: #{tpu_custom_call.1} parent=43 // pred_fallthru
          _
      $region44: #{tpu_custom_call.1} parent=5 // pred_fallthru
        _
      %p709 = scmp.le.s32.totalorder 2, %s20
      // Predicated region
      $region61: #{tpu_custom_call.1} parent=5 // pred_check
        %p710 = pneg %p709
      $region62: #{tpu_custom_call.1} parent=5 // pred_check_branch
        %712 = sbr.rel (%p710) target = $region64
      $region63: #{tpu_custom_call.1} parent=5 // pred_region
        %s713 = ssub.s32 %s20, 2
        // Predicated region
        $region65: #{tpu_custom_call.1} parent=63 // pred_check
          %p714 = pneg %p180
        $region66: #{tpu_custom_call.1} parent=63 // pred_check_branch
          %716 = sbr.rel (%p714) target = $region68
        $region67: #{tpu_custom_call.1} parent=63 // pred_region
          %s717 = sand.u32 %s165, 1
          %s718 = scalar_lea.sflag [#allocation5], %s717
          %s719 = sand.u32 %s165, 1
          %s720 = scalar_lea.vmem [#allocation10], %s719
          %721 = dma.done %s718, 16
        $region68: #{tpu_custom_call.1} parent=63 // pred_fallthru
          _
      $region64: #{tpu_custom_call.1} parent=5 // pred_fallthru
        _
    $region6: #{tpu_custom_call.1} parent=1 // loop_footer
      %s24 = sadd.s32 1, %s20
    $region7: #{tpu_custom_call.1} parent=1 // loop_footer_branch
      %19 = sbr.rel target = $region3
    $region8: #{tpu_custom_call.1} parent=1 // loop_exit
      _
    %722 = vsyncpa [#allocation4], 1
    %s723 = scalar_lea.sflag [#allocation4], 1
    %724 = vsyncpa %s723, 1
    %725 = vsyncpa [#allocation9], 1
    %726 = vsyncpa [#allocation5], 1
    %s727 = scalar_lea.sflag [#allocation5], 1
    %728 = vsyncpa %s727, 1
    %729 = vsyncpa [#allocation6], 1
    %s730 = scalar_lea.sflag [#allocation6], 1
    %731 = vsyncpa %s730, 1

</llo_original>
